<compile_context>
chip_gen: v5e
topology: v5e:2x2
jax: 0.10.0
libtpu: 0.0.40
codegen_flags: <defaults>
</compile_context>

<pallas_src>
import functools

import jax
import jax.numpy as jnp
from jax import lax
from jax.experimental import pallas as pl
from jax.experimental.pallas import tpu as pltpu


def _focal_ce_kernel(preds_ref, labels_ref, out_ref, acc_ref, *, hw, thw):
    """Accumulates the per-image sum of NLL over spatial tiles.

    Grid: (N, n_tiles).  Axis 0 is parallel (per-image), axis 1 is the
    spatial reduction.  out_ref holds one partial CE sum per image.
    """
    j = pl.program_id(1)

    @pl.when(j == 0)
    def _():
        acc_ref[...] = jnp.zeros_like(acc_ref)

    x = preds_ref[0].astype(jnp.float32)       # (C, thw): classes on sublanes
    lbl = labels_ref[0].astype(jnp.int32)      # (1, thw)

    # log-softmax over the class (sublane) axis; keep everything shifted by m
    # so the +m cancels out of nll below.
    m = jnp.max(x, axis=0, keepdims=True)                                   # (1, thw)
    xs = x - m                                                              # (C, thw)
    lse_s = jnp.log(jnp.sum(jnp.exp(xs), axis=0, keepdims=True))            # (1, thw)

    # Gather the (shifted) logit at the label index via one-hot select.
    # (C,1) iota broadcasts against (1,thw) labels -> no (C,thw) iota tensor.
    cls = lax.broadcasted_iota(jnp.int32, (x.shape[0], 1), 0)               # (C, 1)
    picked_s = jnp.sum(jnp.where(cls == lbl, xs, 0.0), axis=0, keepdims=True)

    nll = lse_s - picked_s                                                  # (1, thw)

    # Lane validity: in-bounds spatial position AND non-negative label.
    # OOB lanes of the last (padded) tile hold garbage logits/labels; the
    # jnp.where select drops any NaN/Inf they produce.
    pos = j * thw + lax.broadcasted_iota(jnp.int32, (1, thw), 1)            # (1, thw)
    valid = (pos < hw) & (lbl >= 0)
    acc_ref[...] += jnp.where(valid, nll, 0.0)     # per-lane partial sums (pure VPU)

    @pl.when(j == pl.num_programs(1) - 1)
    def _():
        # single cross-lane reduce per image
        out_ref[0] = jnp.sum(acc_ref[...], axis=1, keepdims=True)           # (1, 1)


def focal_loss(preds, labels, *, alpha=0.5, gamma=2.0, thw=None):
    """preds: (N, C, H, W) float (f32 or bf16); labels: (N, H, W) int -> scalar f32."""
    N, C, H, W = preds.shape
    HW = H * W

    # Free reshapes only — no transpose, no pad, no host-side dtype conversion
    # of preds.  Class axis -> sublanes, flattened spatial axis -> lanes.
    x = preds.reshape(N, C, HW)
    y = labels.reshape(N, 1, HW)
    if not jnp.issubdtype(y.dtype, jnp.integer):
        y = y.astype(jnp.int32)

    # ---- tile-size selection -------------------------------------------------
    pb = x.dtype.itemsize                       # preds bytes / element
    lb = y.dtype.itemsize                       # label bytes / element
    Cp = ((C + 7) // 8) * 8                     # class dim pads to 8 sublanes in VMEM
    # VMEM bytes per lane element: double-buffered preds tile + double-buffered
    # labels tile ((1,thw) pads to 8 sublanes) + f32 accumulator (8-sublane pad).
    per_lane = 2 * Cp * pb + 2 * 8 * lb + 8 * 4

    if thw is None:
        # Amortize the ~0.35us per-grid-step overhead: target >=2 MiB of preds
        # bytes per step (roofline-saturating on v5e/v6e, reasonable on v7x).
        thw = (2 << 20) // max(1, C * pb)
    vmem_budget = 24 << 20                      # headroom under the 32 MiB scoped limit
    thw = min(int(thw), vmem_budget // per_lane)
    hw_pad128 = ((HW + 127) // 128) * 128       # clamp so small shapes use one tile
    thw = max(128, (min(thw, hw_pad128) // 128) * 128)
    n_tiles = pl.cdiv(HW, thw)                  # ragged last tile handled in-kernel
    # ---------------------------------------------------------------------------

    kernel = functools.partial(_focal_ce_kernel, hw=HW, thw=thw)

    # Per-image partial CE sums (megacore-safe: nothing shared across images).
    partials = pl.pallas_call(
        kernel,
        out_shape=jax.ShapeDtypeStruct((N, 1, 1), jnp.float32),
        grid_spec=pltpu.PrefetchScalarGridSpec(
            num_scalar_prefetch=0,
            grid=(N, n_tiles),
            in_specs=[
                pl.BlockSpec((1, C, thw), lambda n, j: (n, 0, j)),
                pl.BlockSpec((1, 1, thw), lambda n, j: (n, 0, j)),
            ],
            out_specs=pl.BlockSpec((1, 1, 1), lambda n, j: (n, 0, 0)),
            scratch_shapes=[pltpu.VMEM((1, thw), jnp.float32)],
        ),
        compiler_params=pltpu.CompilerParams(
            dimension_semantics=("parallel", "arbitrary"),
            vmem_limit_bytes=32 * 1024 * 1024,
        ),
    )(x, y)

    # Trivial scalar epilogue in JAX: mean CE -> focal transform.
    ce = jnp.sum(partials) / jnp.float32(N * HW)
    logpt = -ce
    pt = jnp.exp(logpt)
    return (-((1.0 - pt) ** gamma) * alpha * logpt).astype(jnp.float32)


def _focal_loss_ref(preds, labels, alpha=0.5, gamma=2.0):
    """Pure-JAX reference (mirrors torch CrossEntropyLoss mean reduction)."""
    N, C, H, W = preds.shape
    x = jnp.transpose(preds, (0, 2, 3, 1)).reshape(-1, C).astype(jnp.float32)
    y = labels.reshape(-1)
    logp = jax.nn.log_softmax(x, axis=-1)
    nll = -jnp.take_along_axis(logp, y[:, None], axis=-1)[:, 0]
    ce = jnp.mean(nll)
    logpt = -ce
    pt = jnp.exp(logpt)
    return -((1.0 - pt) ** gamma) * alpha * logpt


if __name__ == "__main__":
    key = jax.random.PRNGKey(0)
    k1, k2, k3, k4 = jax.random.split(key, 4)

    # Case 1: small canonical shape, single spatial tile.
    N, C, H, W = 2, 4, 16, 16
    preds = jax.random.normal(k1, (N, C, H, W), dtype=jnp.float32)
    labels = jax.random.randint(k2, (N, H, W), 0, C, dtype=jnp.int32)
    loss = jax.block_until_ready(focal_loss(preds, labels, alpha=0.5, gamma=2.0))
    ref = _focal_loss_ref(preds, labels, alpha=0.5, gamma=2.0)
    assert jnp.allclose(loss, ref, rtol=1e-5, atol=1e-6), (loss, ref)

    # Case 2: ragged last spatial tile (HW=192 not a multiple of thw=128)
    # exercises the in-kernel OOB-lane masking that replaced jnp.pad.
    N2, C2, H2, W2 = 2, 4, 16, 12
    preds2 = jax.random.normal(k3, (N2, C2, H2, W2), dtype=jnp.float32)
    labels2 = jax.random.randint(k4, (N2, H2, W2), 0, C2, dtype=jnp.int32)
    loss2 = jax.block_until_ready(
        focal_loss(preds2, labels2, alpha=0.5, gamma=2.0, thw=128))
    ref2 = _focal_loss_ref(preds2, labels2, alpha=0.5, gamma=2.0)
    assert jnp.allclose(loss2, ref2, rtol=1e-5, atol=1e-6), (loss2, ref2)

    print("KERNEL_OK")
</pallas_src>

<mosaic_0001>
module attributes {stable_mosaic.version = 11 : i64} {
  func.func @_focal_ce_kernel(%arg0: i32, %arg1: i32, %arg2: memref<1x4x256xf32, #tpu.memory_space<vmem>>, %arg3: memref<1x1x256xi32, #tpu.memory_space<vmem>>, %arg4: memref<1x1x1xf32, #tpu.memory_space<vmem>>, %arg5: memref<1x256xf32, #tpu.memory_space<vmem>>) attributes {dimension_semantics = [#tpu.dimension_semantics<parallel>, #tpu.dimension_semantics<arbitrary>], iteration_bounds = array<i64: 2, 1>, scalar_prefetch = 0 : i64, scratch_operands = 1 : i64, tpu.core_type = #tpu.core_type<tc>, window_params = [{transform_indices = @transform_0, window_bounds = array<i64: 1, 4, 256>}, {transform_indices = @transform_1, window_bounds = array<i64: 1, 1, 256>}, {transform_indices = @transform_2, window_bounds = array<i64: 1, 1, 1>}]} {
    %c0_i32 = arith.constant 0 : i32
    %0 = arith.cmpi eq, %arg1, %c0_i32 : i32
    %1 = arith.extui %0 : i1 to i32
    %c0_i32_0 = arith.constant 0 : i32
    %2 = arith.cmpi ne, %1, %c0_i32_0 : i32
    scf.if %2 {
      %cst_18 = arith.constant 0.000000e+00 : f32
      %41 = vector.broadcast %cst_18 : f32 to vector<1x256xf32>
      %c0_19 = arith.constant 0 : index
      %c0_20 = arith.constant 0 : index
      %42 = vector.load %arg5[%c0_19, %c0_20] : memref<1x256xf32, #tpu.memory_space<vmem>>, vector<1x256xf32>
      tpu.vector_store %arg5[%c0_19, %c0_20], %41 {strides = array<i32>} : memref<1x256xf32, #tpu.memory_space<vmem>>, vector<1x256xf32>,
    } else {
    }
    %c0 = arith.constant 0 : index
    %c0_1 = arith.constant 0 : index
    %c0_2 = arith.constant 0 : index
    %3 = vector.load %arg2[%c0, %c0_1, %c0_2] : memref<1x4x256xf32, #tpu.memory_space<vmem>>, vector<1x4x256xf32>
    %4 = vector.shape_cast %3 : vector<1x4x256xf32> to vector<4x256xf32>
    %c0_3 = arith.constant 0 : index
    %c0_4 = arith.constant 0 : index
    %c0_5 = arith.constant 0 : index
    %5 = vector.load %arg3[%c0_3, %c0_4, %c0_5] : memref<1x1x256xi32, #tpu.memory_space<vmem>>, vector<1x1x256xi32>
    %6 = vector.shape_cast %5 : vector<1x1x256xi32> to vector<1x256xi32>
    %cst = arith.constant dense<0xFF800000> : vector<256xf32>
    %7 = vector.multi_reduction <maximumf>, %4, %cst [0] : vector<4x256xf32> to vector<256xf32>
    %8 = vector.shape_cast %7 : vector<256xf32> to vector<1x256xf32>
    %9 = vector.broadcast %8 : vector<1x256xf32> to vector<4x256xf32>
    %10 = arith.subf %4, %9 : vector<4x256xf32>
    %11 = math.exp %10 : vector<4x256xf32>
    %cst_6 = arith.constant dense<0.000000e+00> : vector<256xf32>
    %12 = vector.multi_reduction <add>, %11, %cst_6 [0] : vector<4x256xf32> to vector<256xf32>
    %13 = vector.shape_cast %12 : vector<256xf32> to vector<1x256xf32>
    %14 = math.log %13 : vector<1x256xf32>
    %15 = tpu.iota {dimensions = array<i32: 0>} : vector<4x1xi32>
    %16 = vector.broadcast %15 : vector<4x1xi32> to vector<4x256xi32>
    %17 = vector.broadcast %6 : vector<1x256xi32> to vector<4x256xi32>
    %18 = arith.cmpi eq, %16, %17 : vector<4x256xi32>
    %cst_7 = arith.constant 0.000000e+00 : f32
    %19 = vector.broadcast %cst_7 : f32 to vector<4x256xf32>
    %20 = arith.select %18, %10, %19 : vector<4x256xi1>, vector<4x256xf32>
    %cst_8 = arith.constant dense<0.000000e+00> : vector<256xf32>
    %21 = vector.multi_reduction <add>, %20, %cst_8 [0] : vector<4x256xf32> to vector<256xf32>
    %22 = vector.shape_cast %21 : vector<256xf32> to vector<1x256xf32>
    %23 = arith.subf %14, %22 : vector<1x256xf32>
    %c256_i32 = arith.constant 256 : i32
    %24 = arith.muli %arg1, %c256_i32 : i32
    %25 = tpu.iota {dimensions = array<i32: 1>} : vector<1x256xi32>
    %26 = vector.broadcast %24 : i32 to vector<1x256xi32>
    %27 = arith.addi %26, %25 : vector<1x256xi32>
    %c256_i32_9 = arith.constant 256 : i32
    %28 = vector.broadcast %c256_i32_9 : i32 to vector<1x256xi32>
    %29 = arith.cmpi slt, %27, %28 : vector<1x256xi32>
    %c0_i32_10 = arith.constant 0 : i32
    %30 = vector.broadcast %c0_i32_10 : i32 to vector<1x256xi32>
    %31 = arith.cmpi sge, %6, %30 : vector<1x256xi32>
    %32 = arith.andi %29, %31 : vector<1x256xi1>
    %c0_11 = arith.constant 0 : index
    %c0_12 = arith.constant 0 : index
    %33 = vector.load %arg5[%c0_11, %c0_12] : memref<1x256xf32, #tpu.memory_space<vmem>>, vector<1x256xf32>
    %cst_13 = arith.constant 0.000000e+00 : f32
    %34 = vector.broadcast %cst_13 : f32 to vector<1x256xf32>
    %35 = arith.select %32, %23, %34 : vector<1x256xi1>, vector<1x256xf32>
    %36 = arith.addf %33, %35 : vector<1x256xf32>
    %c0_14 = arith.constant 0 : index
    %c0_15 = arith.constant 0 : index
    %37 = vector.load %arg5[%c0_14, %c0_15] : memref<1x256xf32, #tpu.memory_space<vmem>>, vector<1x256xf32>
    tpu.vector_store %arg5[%c0_14, %c0_15], %36 {strides = array<i32>} : memref<1x256xf32, #tpu.memory_space<vmem>>, vector<1x256xf32>,
    %c0_i32_16 = arith.constant 0 : i32
    %38 = arith.cmpi eq, %arg1, %c0_i32_16 : i32
    %39 = arith.extui %38 : i1 to i32
    %c0_i32_17 = arith.constant 0 : i32
    %40 = arith.cmpi ne, %39, %c0_i32_17 : i32
    scf.if %40 {
      %c0_18 = arith.constant 0 : index
      %c0_19 = arith.constant 0 : index
      %41 = vector.load %arg5[%c0_18, %c0_19] : memref<1x256xf32, #tpu.memory_space<vmem>>, vector<1x256xf32>
      %cst_20 = arith.constant dense<0.000000e+00> : vector<1xf32>
      %42 = vector.multi_reduction <add>, %41, %cst_20 [1] : vector<1x256xf32> to vector<1xf32>
      %43 = vector.shape_cast %42 : vector<1xf32> to vector<1x1xf32>
      %c0_21 = arith.constant 0 : index
      %c0_22 = arith.constant 0 : index
      %c0_23 = arith.constant 0 : index
      %44 = vector.load %arg4[%c0_21, %c0_22, %c0_23] : memref<1x1x1xf32, #tpu.memory_space<vmem>>, vector<1x1x1xf32>
      %45 = vector.shape_cast %44 : vector<1x1x1xf32> to vector<1x1xf32>
      %46 = vector.shape_cast %43 : vector<1x1xf32> to vector<1x1x1xf32>
      tpu.vector_store %arg4[%c0_21, %c0_22, %c0_23], %46 {strides = array<i32>} : memref<1x1x1xf32, #tpu.memory_space<vmem>>, vector<1x1x1xf32>,
    } else {
    }
    return
  }
  func.func @transform_0(%arg0: i32, %arg1: i32) -> (i32, i32, i32) {
    %c0_i32 = arith.constant 0 : i32
    %c0_i32_0 = arith.constant 0 : i32
    return %arg0, %c0_i32, %arg1 : i32, i32, i32
  }
  func.func @transform_1(%arg0: i32, %arg1: i32) -> (i32, i32, i32) {
    %c0_i32 = arith.constant 0 : i32
    %c0_i32_0 = arith.constant 0 : i32
    return %arg0, %c0_i32, %arg1 : i32, i32, i32
  }
  func.func @transform_2(%arg0: i32, %arg1: i32) -> (i32, i32, i32) {
    %c0_i32 = arith.constant 0 : i32
    %c0_i32_0 = arith.constant 0 : i32
    %c0_i32_1 = arith.constant 0 : i32
    return %arg0, %c0_i32, %c0_i32_0 : i32, i32, i32
  }
}

</mosaic_0001>

<llo_original>
// kernel: tpu_custom_call.1
$region0: #{tpu_custom_call.1}
  #allocation0 [shape = 'u32[]', space=smem, size = 0x4, offset = 0x4, fixed_abs, tag = 'smem constant byte address 0x4 - core index']
  #allocation1 [shape = 'u32[72,128]{1,0:T(1,128)}', space=vmem, size = 0x9000, scoped, tag = 'internal scratch']
  #allocation2 [shape = 'f32[1,256]{1,0:T(1,128)}', space=vmem, size = 0x400, scoped, tag = 'scratch operand']
  %s0 = inlined_call_operand.hbm [shape: f32[2,4,256], index: 0, kind: input, shape index: {}]
  %s1 = inlined_call_operand.hbm [shape: s32[2,1,256], index: 1, kind: input, shape index: {}]
  %s2 = inlined_call_operand.vmem [shape: f32[2,1,1], index: 2, kind: output, shape index: {}]
  %s3 = sld [smem:[#allocation0]]
  $region57: #{tpu_custom_call.1} parent=0
    _
  %s5 = ssub.s32 1, %s3
  %s6 = scalar_select 0, %s5, %s3
  $region1: #{tpu_custom_call.1} parent=0
    #allocation3 [shape = 'u8[8192]{0}', space=vmem, size = 0x2000, scoped, tag = 'input window, operand 0']
    #allocation4 [shape = 's32[2]{0}', space=sflag, size = 0x8, scoped, tag = 'scoped memory for tpu_custom_call.1']
    #allocation5 [shape = 'u8[2048]{0}', space=vmem, size = 0x800, scoped, tag = 'input window, operand 1']
    #allocation6 [shape = 's32[2]{0}', space=sflag, size = 0x8, scoped, tag = 'scoped memory for tpu_custom_call.1']
    %7 = vsyncpa [#allocation4], 0
    %s8 = scalar_lea.sflag [#allocation4], 1
    %9 = vsyncpa %s8, 0
    %10 = vsyncpa [#allocation6], 0
    %s11 = scalar_lea.sflag [#allocation6], 1
    %12 = vsyncpa %s11, 0
    loop: start=0, step=1, limit=4
    $region2: #{tpu_custom_call.1} parent=1 // loop_pre_header
      _
    $region3: #{tpu_custom_call.1} parent=1 // loop_header
      %s14 = sphi 0, %s18
      %p15 = scmp.ge.s32.totalorder %s14, 4
      %s21 = sphi 0, %s33
      %s22 = sphi 0, %s29
      %s23 = sphi 0, %s21
      %s24 = sphi 0, %s22
      %s25 = sphi 0, %s23
      %s26 = sphi 0, %s24
      %s38 = sphi 0, %s40
      %s41 = sphi 0, %s38
      %s42 = sphi 0, %s41
      %s58 = sphi 0, %s42
      %s66 = sphi 0, %s68
      %s69 = sphi 0, %s66
      %s70 = sphi 0, %s69
      %s86 = sphi 0, %s70
      %s92 = sphi 0, %s94
      %s95 = sphi 0, %s92
      %s96 = sphi 0, %s95
      %s112 = sphi 0, %s96
    $region4: #{tpu_custom_call.1} parent=1 // loop_header_branch
      %17 = sbr.rel (%p15) target = $region8
    $region5: #{tpu_custom_call.1} parent=1 // loop_body
      %s19 = ssub.s32 %s14, 1
      %s20 = ssub.s32 %s14, 2
      %s27 = sadd.s32 1, %s22
      %p28 = scmp.ge.s32.totalorder %s27, 1
      %s29 = scalar_select %p28, 0, %s27
      %s30 = sadd.s32 1, %s21
      %s31 = scalar_select %p28, %s30, %s21
      %p32 = scmp.ge.s32.totalorder %s31, 2
      %s33 = scalar_select %p32, 0, %s31
      %s34 = ssub.s32 %s21, %s33
      %s35 = ssub.s32 %s22, %s29
      %s36 = sor.u32 %s34, %s35
      %p37 = scmp.eq.s32.totalorder %s36, 0
      %s39 = sadd.s32 %s38, 1
      %s40 = scalar_select %p37, %s38, %s39
      %p43 = pneg %p37
      %p44 = scmp.eq.s32.totalorder %s14, 1
      %p45 = por %p43, %p44
      %p46 = scmp.ne.s32.totalorder %s38, %s41
      %p47 = scmp.eq.s32.totalorder %s14, 0
      %p48 = por %p46, %p47
      %p49 = scmp.ne.s32.totalorder %s38, %s41
      %p50 = scmp.eq.s32.totalorder %s19, 1
      %p51 = por %p49, %p50
      %p52 = scmp.ne.s32.totalorder %s41, %s42
      %p53 = scmp.eq.s32.totalorder %s19, 0
      %p54 = por %p52, %p53
      %p55 = scmp.ne.s32.totalorder %s41, %s42
      %p56 = scmp.eq.s32.totalorder %s20, 1
      %p57 = por %p55, %p56
      %p59 = scmp.ne.s32.totalorder %s42, %s58
      %p60 = scmp.eq.s32.totalorder %s20, 0
      %p61 = por %p59, %p60
      %s62 = ssub.s32 %s21, %s33
      %s63 = ssub.s32 %s22, %s29
      %s64 = sor.u32 %s62, %s63
      %p65 = scmp.eq.s32.totalorder %s64, 0
      %s67 = sadd.s32 %s66, 1
      %s68 = scalar_select %p65, %s66, %s67
      %p71 = pneg %p65
      %p72 = scmp.eq.s32.totalorder %s14, 1
      %p73 = por %p71, %p72
      %p74 = scmp.ne.s32.totalorder %s66, %s69
      %p75 = scmp.eq.s32.totalorder %s14, 0
      %p76 = por %p74, %p75
      %p77 = scmp.ne.s32.totalorder %s66, %s69
      %p78 = scmp.eq.s32.totalorder %s19, 1
      %p79 = por %p77, %p78
      %p80 = scmp.ne.s32.totalorder %s69, %s70
      %p81 = scmp.eq.s32.totalorder %s19, 0
      %p82 = por %p80, %p81
      %p83 = scmp.ne.s32.totalorder %s69, %s70
      %p84 = scmp.eq.s32.totalorder %s20, 1
      %p85 = por %p83, %p84
      %p87 = scmp.ne.s32.totalorder %s70, %s86
      %p88 = scmp.eq.s32.totalorder %s20, 0
      %p89 = por %p87, %p88
      %s90 = ssub.s32 %s21, %s33
      %p91 = scmp.eq.s32.totalorder %s90, 0
      %s93 = sadd.s32 %s92, 1
      %s94 = scalar_select %p91, %s92, %s93
      %p97 = pneg %p91
      %p98 = scmp.eq.s32.totalorder %s14, 1
      %p99 = por %p97, %p98
      %p100 = scmp.ne.s32.totalorder %s92, %s95
      %p101 = scmp.eq.s32.totalorder %s14, 0
      %p102 = por %p100, %p101
      %p103 = scmp.ne.s32.totalorder %s92, %s95
      %p104 = scmp.eq.s32.totalorder %s19, 1
      %p105 = por %p103, %p104
      %p106 = scmp.ne.s32.totalorder %s95, %s96
      %p107 = scmp.eq.s32.totalorder %s19, 0
      %p108 = por %p106, %p107
      %p109 = scmp.ne.s32.totalorder %s95, %s96
      %p110 = scmp.eq.s32.totalorder %s20, 1
      %p111 = por %p109, %p110
      %p113 = scmp.ne.s32.totalorder %s96, %s112
      %p114 = scmp.eq.s32.totalorder %s20, 0
      %p115 = por %p113, %p114
      %p116 = scmp.le.s32.totalorder 1, %s14
      %p117 = scmp.lt.s32.totalorder %s14, 3
      %p118 = pnand %p116, %p117
      %p119 = pneg %p118
      // Predicated region
      $region9: #{tpu_custom_call.1} parent=5 // pred_check
        _
      $region10: #{tpu_custom_call.1} parent=5 // pred_check_branch
        %121 = sbr.rel (%p118) target = $region12
      $region11: #{tpu_custom_call.1} parent=5 // pred_region
        %s122 = ssub.s32 %s14, 1
      $region12: #{tpu_custom_call.1} parent=5 // pred_fallthru
        _
      %p123 = scmp.lt.s32.totalorder %s14, 2
      // Predicated region
      $region13: #{tpu_custom_call.1} parent=5 // pred_check
        %p124 = pneg %p123
      $region14: #{tpu_custom_call.1} parent=5 // pred_check_branch
        %126 = sbr.rel (%p124) target = $region16
      $region15: #{tpu_custom_call.1} parent=5 // pred_region
        // Predicated region
        $region17: #{tpu_custom_call.1} parent=15 // pred_check
          %p127 = pneg %p48
        $region18: #{tpu_custom_call.1} parent=15 // pred_check_branch
          %129 = sbr.rel (%p127) target = $region20
        $region19: #{tpu_custom_call.1} parent=15 // pred_region
          %s130 = sand.u32 %s38, 1
          %s131 = scalar_lea.sflag [#allocation4], %s130
          %s132 = sand.u32 %s38, 1
          %s133 = smul.addr %s132, 8
          %s134 = scalar_lea.vmem [#allocation3], %s133
          %s135 = smul.u32 2, %s22
          %137 = vsyncadd %s131, 0
          %s138 = smul.addr %s21, 2
          %s139 = sadd.s32 %s135, %s138
          %s140 = smul.addr %s139, 4
          %s141 = scalar_lea.hbm %s0, %s140
          %s143 = sshll.u32 %s141, 4
          %s144 = int_to_ptr.hbm [resolvable:$true] %s143
          %s145 = sshll.u32 %s134, 4
          %s146 = int_to_ptr.vmem [resolvable:$true] %s145
          %148 = dma.hbm_to_vmem [thread:$0]  %s144, 128, %s146, %s131
        $region20: #{tpu_custom_call.1} parent=15 // pred_fallthru
          _
        // Predicated region
        $region21: #{tpu_custom_call.1} parent=15 // pred_check
          %p149 = pneg %p76
        $region22: #{tpu_custom_call.1} parent=15 // pred_check_branch
          %151 = sbr.rel (%p149) target = $region24
        $region23: #{tpu_custom_call.1} parent=15 // pred_region
          %s152 = sand.u32 %s66, 1
          %s153 = scalar_lea.sflag [#allocation6], %s152
          %s154 = sand.u32 %s66, 1
          %s155 = smul.addr %s154, 2
          %s156 = scalar_lea.vmem [#allocation5], %s155
          %s157 = smul.u32 2, %s22
          %159 = vsyncadd %s153, 0
          %s160 = smul.addr %s21, 2
          %s161 = sadd.s32 %s157, %s160
          %s162 = scalar_lea.hbm %s1, %s161
          %s164 = sshll.u32 %s162, 4
          %s165 = int_to_ptr.hbm [resolvable:$true] %s164
          %s166 = sshll.u32 %s156, 4
          %s167 = int_to_ptr.vmem [resolvable:$true] %s166
          %169 = dma.hbm_to_vmem [thread:$0]  %s165, 32, %s167, %s153
        $region24: #{tpu_custom_call.1} parent=15 // pred_fallthru
          _
      $region16: #{tpu_custom_call.1} parent=5 // pred_fallthru
        _
      %p170 = scmp.le.s32.totalorder 1, %s14
      %p171 = scmp.lt.s32.totalorder %s14, 3
      %p172 = pnand %p170, %p171
      %p173 = pneg %p172
      // Predicated region
      $region25: #{tpu_custom_call.1} parent=5 // pred_check
        _
      $region26: #{tpu_custom_call.1} parent=5 // pred_check_branch
        %175 = sbr.rel (%p172) target = $region28
      $region27: #{tpu_custom_call.1} parent=5 // pred_region
        %s176 = ssub.s32 %s14, 1
        %s177 = sand.u32 %s41, 1
        %s178 = scalar_lea.sflag [#allocation4], %s177
        %s179 = sand.u32 %s41, 1
        %s180 = smul.addr %s179, 8
        %s181 = scalar_lea.vmem [#allocation3], %s180
        // Predicated region
        $region29: #{tpu_custom_call.1} parent=27 // pred_check
          %p182 = pneg %p54
        $region30: #{tpu_custom_call.1} parent=27 // pred_check_branch
          %184 = sbr.rel (%p182) target = $region32
        $region31: #{tpu_custom_call.1} parent=27 // pred_region
          %186 = dma.done %s178, 128
        $region32: #{tpu_custom_call.1} parent=27 // pred_fallthru
          _
        %s187 = sand.u32 %s69, 1
        %s188 = scalar_lea.sflag [#allocation6], %s187
        %s189 = sand.u32 %s69, 1
        %s190 = smul.addr %s189, 2
        %s191 = scalar_lea.vmem [#allocation5], %s190
        // Predicated region
        $region33: #{tpu_custom_call.1} parent=27 // pred_check
          %p192 = pneg %p82
        $region34: #{tpu_custom_call.1} parent=27 // pred_check_branch
          %194 = sbr.rel (%p192) target = $region36
        $region35: #{tpu_custom_call.1} parent=27 // pred_region
          %196 = dma.done %s188, 32
        $region36: #{tpu_custom_call.1} parent=27 // pred_fallthru
          _
        %s197 = sand.u32 %s41, 1
        %s198 = scalar_lea.sflag [#allocation4], %s197
        %s199 = sand.u32 %s41, 1
        %s200 = smul.addr %s199, 8
        %s201 = scalar_lea.vmem [#allocation3], %s200
        %p202 = pneg %p54
        %p203 = pneg %p51
        %s204 = sand.u32 %s69, 1
        %s205 = scalar_lea.sflag [#allocation6], %s204
        %s206 = sand.u32 %s69, 1
        %s207 = smul.addr %s206, 2
        %s208 = scalar_lea.vmem [#allocation5], %s207
        %p209 = pneg %p82
        %p210 = pneg %p79
        %p211 = pneg %p108
        %p212 = pneg %p105
        %p213 = scmp.lt.s32.totalorder %s23, 1
        %s214 = scalar_select %p213, %s23, 1
        %s215 = scalar_lea.vmem %s2, %s214
        %s216 = smul.u32 2, %s24
        %s217 = smul.u32 2, %s24
        %p218 = scmp.lt.s32.totalorder %s23, 1
        %s219 = scalar_select %p218, %s23, 1
        %s220 = scalar_lea.vmem %s2, %s219
        %p221 = scmp.eq.s32.totalorder %s24, 0
        // Predicated region
        $region37: #{tpu_custom_call.1} parent=27 // pred_check
          %p222 = pneg %p221
        $region38: #{tpu_custom_call.1} parent=27 // pred_check_branch
          %224 = sbr.rel (%p222) target = $region40
        $region39: #{tpu_custom_call.1} parent=27 // pred_region
          %v225 = vlaneseq
          %vm226 = vcmp.ge.s32.totalorder %v225, 0
          %vm227 = vcmp.lt.s32.totalorder %v225, 256
          %vm228 = vmand %vm226, %vm227
          %229 = vst.msk [vmem:[#allocation2] sm:$0x3] %vm228, 0.0
        $region40: #{tpu_custom_call.1} parent=27 // pred_fallthru
          _
        %v230 = vld [vmem:[%s181] sm:$0xff]
        %v231 = vld [vmem:[%s191] sm:$0x3]
        %233 = vst [vmem:[#allocation1] ss:$2 sm:$0xff] %v230
        %v234 = vld.sshfl [vmem:[#allocation1] sm:$0xff pattern:$0x75316420]
        %v235 = vld.sshfl [vmem:[#allocation1 + $0x8] sm:$0xff pattern:$0x75316420]
        %vm238 = vcmask 1043456
        %v239 = vsel %vm238, %v234, -inf
        %v240 = vrot.slane %v239, 4
        %v241 = vmax.f32 %v239, %v240
        %v242 = vrot.slane %v241, 2
        %v243 = vmax.f32 %v241, %v242
        %v244 = vrot.slane %v243, 1
        %v245 = vmax.f32 %v243, %v244
        %v246 = vsel %vm238, %v235, -inf
        %v247 = vrot.slane %v246, 4
        %v248 = vmax.f32 %v246, %v247
        %v249 = vrot.slane %v248, 2
        %v250 = vmax.f32 %v248, %v249
        %v251 = vrot.slane %v250, 1
        %v252 = vmax.f32 %v250, %v251
        %v255 = vrot.slane %v252, 4
        %v256 = vsel %vm238, %v245, %v255
        %v258 = vsub.f32 %v230, %v256
        %v259 = vmul.f32 %v258, 1.442695
        %v260 = vpow.pop %v259
        %262 = vst [vmem:[#allocation1] ss:$2 sm:$0xff] %v260
        %v263 = vld.sshfl [vmem:[#allocation1] sm:$0xff pattern:$0x75316420]
        %v264 = vld.sshfl [vmem:[#allocation1 + $0x8] sm:$0xff pattern:$0x75316420]
        %v267 = vsel %vm238, %v263, 0.0
        %v268 = vrot.slane %v267, 4
        %v269 = vadd.f32 %v267, %v268
        %v270 = vrot.slane %v269, 2
        %v271 = vadd.f32 %v269, %v270
        %v272 = vrot.slane %v271, 1
        %v273 = vadd.f32 %v271, %v272
        %v274 = vsel %vm238, %v264, 0.0
        %v275 = vrot.slane %v274, 4
        %v276 = vadd.f32 %v274, %v275
        %v277 = vrot.slane %v276, 2
        %v278 = vadd.f32 %v276, %v277
        %v279 = vrot.slane %v278, 1
        %v280 = vadd.f32 %v278, %v279
        %v281 = vlog2.pop %v273
        %v282 = vmul.f32 %v281, 0.6931472
        %v283 = vlog2.pop %v280
        %v284 = vmul.f32 %v283, 0.6931472
        %v285 = vlaneseq
        %v286 = vshrl.u32 %v285, 7
        %v287 = vperm.slane %v231, 0
        %v288 = vperm.slane %v231, 1
        %vm289 = vcmp.eq.s32.totalorder %v286, %v287
        %vm290 = vcmp.eq.s32.totalorder %v286, %v288
        %292 = vst [vmem:[#allocation1] ss:$2 sm:$0xff] %v258
        %v293 = vld.sshfl [vmem:[#allocation1] sm:$0xff pattern:$0x75316420]
        %v294 = vld.sshfl [vmem:[#allocation1 + $0x8] sm:$0xff pattern:$0x75316420]
        %v297 = vsel %vm289, %v293, 0.0
        %v298 = vsel %vm290, %v294, 0.0
        %v299 = vsel %vm238, %v297, 0.0
        %v300 = vrot.slane %v299, 4
        %v301 = vadd.f32 %v299, %v300
        %v302 = vrot.slane %v301, 2
        %v303 = vadd.f32 %v301, %v302
        %v304 = vrot.slane %v303, 1
        %v305 = vadd.f32 %v303, %v304
        %v306 = vsel %vm238, %v298, 0.0
        %v307 = vrot.slane %v306, 4
        %v308 = vadd.f32 %v306, %v307
        %v309 = vrot.slane %v308, 2
        %v310 = vadd.f32 %v308, %v309
        %v311 = vrot.slane %v310, 1
        %v312 = vadd.f32 %v310, %v311
        %v313 = vsub.f32 %v282, %v305
        %v314 = vsub.f32 %v284, %v312
        %s315 = smul.u32 %s24, 256
        %v316 = vlaneseq
        %v317 = vand.u32 %v316, 127
        %v318 = vadd.s32 %v317, 128
        %v319 = vstv %s315
        %v320 = vadd.s32 %v319, %v317
        %v321 = vadd.s32 %v319, %v318
        %vm322 = vcmp.lt.s32.totalorder %v320, 256
        %vm323 = vcmp.lt.s32.totalorder %v321, 256
        %vm324 = vcmp.ge.s32.totalorder %v231, 0
        %v325 = vsel %vm324, 1, 0
        %v326 = vperm.slane %v325, 0
        %v327 = vperm.slane %v325, 1
        %vm328 = vcmp.ne.s32.totalorder %v326, 0
        %vm329 = vcmp.ne.s32.totalorder %v327, 0
        %vm330 = vmand %vm322, %vm328
        %vm331 = vmand %vm323, %vm329
        %v332 = vld [vmem:[#allocation2] sm:$0x3]
        %v333 = vsel %vm330, %v313, 0.0
        %v334 = vsel %vm331, %v314, 0.0
        %v337 = vrot.slane %v334, 7
        %vm338 = vcmask 1040384
        %v339 = vsel %vm338, %v333, %v337
        %v341 = vadd.f32 %v332, %v339
        %v342 = vlaneseq
        %vm343 = vcmp.ge.s32.totalorder %v342, 0
        %vm344 = vcmp.lt.s32.totalorder %v342, 256
        %vm345 = vmand %vm343, %vm344
        %346 = vst.msk [vmem:[#allocation2] sm:$0x3] %vm345, %v341
        // Predicated region
        $region41: #{tpu_custom_call.1} parent=27 // pred_check
          %p347 = pneg %p221
        $region42: #{tpu_custom_call.1} parent=27 // pred_check_branch
          %349 = sbr.rel (%p347) target = $region44
        $region43: #{tpu_custom_call.1} parent=27 // pred_region
          %v350 = vld [vmem:[#allocation2] sm:$0x3]
          %v352 = vperm.slane %v350, 0
          %v353 = vperm.slane %v350, 1
          %v356 = vsel %vm338, %v352, 0.0
          %v357 = vsel %vm338, %v353, 0.0
          %v358 = vadd.f32 %v356, %v357
          %359 = vadd.xlane.f32.xlu0 %v358
          %v360 = vpop.xlane.xlu0 %359
          %vm361 = vcmask 0
          %362 = vst.msk [vmem:[%s220] sm:$0x1] %vm361, %v360
        $region44: #{tpu_custom_call.1} parent=27 // pred_fallthru
          _
        %p363 = scmp.lt.s32.totalorder %s23, 1
        %s364 = scalar_select %p363, %s23, 1
        %s365 = scalar_lea.vmem %s2, %s364
        // Predicated region
        $region45: #{tpu_custom_call.1} parent=27 // pred_check
          %p366 = pneg %p105
        $region46: #{tpu_custom_call.1} parent=27 // pred_check_branch
          %368 = sbr.rel (%p366) target = $region48
        $region47: #{tpu_custom_call.1} parent=27 // pred_region
          _
        $region48: #{tpu_custom_call.1} parent=27 // pred_fallthru
          _
      $region28: #{tpu_custom_call.1} parent=5 // pred_fallthru
        _
      %p369 = scmp.le.s32.totalorder 2, %s14
      // Predicated region
      $region49: #{tpu_custom_call.1} parent=5 // pred_check
        %p370 = pneg %p369
      $region50: #{tpu_custom_call.1} parent=5 // pred_check_branch
        %372 = sbr.rel (%p370) target = $region52
      $region51: #{tpu_custom_call.1} parent=5 // pred_region
        %s373 = ssub.s32 %s14, 2
        // Predicated region
        $region53: #{tpu_custom_call.1} parent=51 // pred_check
          %p374 = pneg %p111
        $region54: #{tpu_custom_call.1} parent=51 // pred_check_branch
          %376 = sbr.rel (%p374) target = $region56
        $region55: #{tpu_custom_call.1} parent=51 // pred_region
          %p377 = scmp.lt.s32.totalorder %s25, 1
          %s378 = scalar_select %p377, %s25, 1
          %s379 = scalar_lea.vmem %s2, %s378
        $region56: #{tpu_custom_call.1} parent=51 // pred_fallthru
          _
      $region52: #{tpu_custom_call.1} parent=5 // pred_fallthru
        _
    $region6: #{tpu_custom_call.1} parent=1 // loop_footer
      %s18 = sadd.s32 1, %s14
    $region7: #{tpu_custom_call.1} parent=1 // loop_footer_branch
      %13 = sbr.rel target = $region3
    $region8: #{tpu_custom_call.1} parent=1 // loop_exit
      _
    %380 = vsyncpa [#allocation4], 1
    %s381 = scalar_lea.sflag [#allocation4], 1
    %382 = vsyncpa %s381, 1
    %383 = vsyncpa [#allocation6], 1
    %s384 = scalar_lea.sflag [#allocation6], 1
    %385 = vsyncpa %s384, 1

</llo_original>
